<compile_context>
chip_gen: v5e
topology: v5e:2x2
jax: 0.10.0
libtpu: 0.0.40
codegen_flags: <defaults>
</compile_context>

<pallas_src>
import functools

import jax
import jax.numpy as jnp
from jax.experimental import pallas as pl
from jax.experimental.pallas import tpu as pltpu


# ---------------------------------------------------------------------------
# hardware-aware budgets
# ---------------------------------------------------------------------------
def _tpu_vmem_and_cores():
    """Best-effort (VMEM bytes per TensorCore, TensorCores behind one device)."""
    vmem = 64 << 20          # conservative default (v7x: 64 MiB / TC)
    cores = 1
    try:
        info = pltpu.get_tpu_info()
        v = getattr(info, "vmem_capacity_bytes", None)
        if v:
            vmem = int(v)
    except Exception:
        pass
    try:
        kind = getattr(jax.devices()[0], "device_kind", "").lower()
        if "v7" in kind or "v4" in kind:   # megacore parts: 2 TCs per device
            cores = 2
    except Exception:
        pass
    return vmem, cores


def _pick_batch_tile(batch, per_batch_bytes, target_bytes, num_cores):
    """Largest divisor of batch whose packed block stays under target_bytes.

    On megacore parts keep >= 2 grid steps when batch >= 2 so both cores get
    work; on single-core parts (v5e/v6e) pack as large as possible."""
    best = 1
    for d in range(1, batch + 1):
        if batch % d:
            continue
        if d * per_batch_bytes > target_bytes:
            continue
        if num_cores > 1 and batch >= 2 and batch // d < 2:
            continue
        best = d
    return best


def _largest_div_mult(n, m, cap):
    """Largest divisor of n that is a multiple of m and <= cap (None if none)."""
    best = None
    top = min(int(cap), n)
    d = m
    while d <= top:
        if n % d == 0:
            best = d
        d += m
    return best


def _two_pass_tiling(C, HW, itemsize, budget, want_channel_split):
    """Pick (Ct, THW, HW_work, needs_pad) for the two-pass path.

    Prefers tilings that need no HBM-side padding: spatial tiles must be
    multiples of 128 dividing HW (or the full HW), channel tiles multiples of
    8 dividing C (or the full C).  Padding is a rare last resort."""
    Ct = C
    if want_channel_split:                       # v7x, B == 1: feed both TCs
        ct2 = _largest_div_mult(C, 8, C // 2)
        if ct2 is not None:
            Ct = ct2
    if Ct * HW * itemsize <= budget:
        return Ct, HW, HW, False
    if HW % 128 == 0:
        HW_work, pad = HW, False
    else:
        # try shrinking channels with the full spatial extent first (no pad)
        cap_ct = budget // (HW * itemsize)
        ct3 = _largest_div_mult(C, 8, min(cap_ct, Ct))
        if ct3 is not None:
            return ct3, HW, HW, False
        # rare fallback: zero-pad spatial axis to a multiple of 128
        HW_work = -(-HW // 128) * 128
        pad = True
    cap_thw = budget // (Ct * itemsize)
    THW = _largest_div_mult(HW_work, 128, cap_thw)
    if THW is None:
        THW = 128
        cap_ct = budget // (THW * itemsize)
        ct4 = _largest_div_mult(C, 8, min(cap_ct, Ct))
        if ct4 is not None:
            Ct = ct4
    return Ct, THW, HW_work, pad


# ---------------------------------------------------------------------------
# kernels
# ---------------------------------------------------------------------------
def _ca_fused_kernel(x_ref, w1t_ref, b1_ref, w2t_ref, b2_ref, o_ref, *, inv_hw):
    """One batch tile: pool -> squeeze/excite (MXU, lane-dense) -> rescale."""
    x = x_ref[...]                                               # (Bt, C, HW)
    pooled = jnp.sum(x.astype(jnp.float32), axis=-1) * inv_hw    # (Bt, C)
    h = jnp.dot(pooled, w1t_ref[...], preferred_element_type=jnp.float32)
    h = jnp.maximum(h + b1_ref[...], 0.0)                        # (Bt, Cr)
    s = jnp.dot(h, w2t_ref[...], preferred_element_type=jnp.float32)
    s = jax.nn.sigmoid(s + b2_ref[...])                          # (Bt, C)
    o_ref[...] = (x.astype(jnp.float32) * s[:, :, None]).astype(o_ref.dtype)


def _pool_partial_kernel(x_ref, s_ref):
    """Accumulate per-channel spatial sums; spatial-tile axis last (arbitrary)."""
    @pl.when(pl.program_id(2) == 0)
    def _():
        s_ref[...] = jnp.zeros_like(s_ref)
    s_ref[...] += jnp.sum(x_ref[...].astype(jnp.float32), axis=-1,
                          keepdims=True)                          # (1, Ct, 1)


def _scale_kernel(x_ref, s_ref, o_ref):
    # (1, Ct, THW) * (1, Ct, 1) broadcast rescale
    o_ref[...] = (x_ref[...].astype(jnp.float32) * s_ref[...]).astype(o_ref.dtype)


# ---------------------------------------------------------------------------
# wrapper
# ---------------------------------------------------------------------------
def ca_layer(x, w1, b1, w2, b2, *, force_two_pass=False, two_pass_tile_bytes=None):
    """Channel attention forward.

    x: (B, C, H, W).  Weights use squeezed PyTorch Conv2d-1x1 shapes:
    w1 (C//8, C), b1 (C//8, 1), w2 (C, C//8), b2 (C, 1).
    """
    B, C, H, W = x.shape
    Cr = w1.shape[0]
    HW = H * W
    itemsize = jnp.dtype(x.dtype).itemsize
    inv_hw = 1.0 / HW

    # lane-dense parameter layouts: pre-transposed so both gate matmuls are
    # (Bt,C)@(C,Cr) and (Bt,Cr)@(Cr,C) with dense output lanes; biases on lanes.
    w1t = jnp.transpose(w1).astype(jnp.float32)        # (C, Cr)
    w2t = jnp.transpose(w2).astype(jnp.float32)        # (Cr, C)
    b1r = b1.reshape(1, Cr).astype(jnp.float32)
    b2r = b2.reshape(1, C).astype(jnp.float32)
    weight_bytes = 4 * (w1.size + w2.size + Cr + C)

    # generation-aware VMEM budgets
    vmem, cores = _tpu_vmem_and_cores()
    vmem_cap = (vmem * 7) // 8                       # clamp for vmem_limit_bytes
    fused_budget = (vmem * 3) // 4                   # 4x block + weights must fit
    pack_target = max(8 << 20,
                      min(vmem // 5,
                          (vmem_cap - 2 * weight_bytes - (1 << 20)) // 4))
    tile_budget = (two_pass_tile_bytes if two_pass_tile_bytes is not None
                   else max(2 << 20, vmem // 8))

    per_batch_bytes = C * HW * itemsize
    use_fused = (not force_two_pass) and (
        4 * per_batch_bytes + 2 * weight_bytes <= fused_budget)

    x2 = x.reshape(B, C, HW)                         # contiguous view, no copy

    if use_fused:
        # -------- fused path: one read + one write of x, no pad / slice -----
        Bt = _pick_batch_tile(B, per_batch_bytes, pack_target, cores)
        block_bytes = Bt * per_batch_bytes
        vmem_limit = int(min(max(4 * block_bytes + 2 * weight_bytes + (1 << 20),
                                 16 << 20), vmem_cap))
        out = pl.pallas_call(
            functools.partial(_ca_fused_kernel, inv_hw=inv_hw),
            out_shape=jax.ShapeDtypeStruct((B, C, HW), x.dtype),
            grid_spec=pltpu.PrefetchScalarGridSpec(
                num_scalar_prefetch=0,
                grid=(B // Bt,),
                in_specs=[
                    # TODO(synk): sweep pipeline_mode=pl.Buffered(3) on this
                    # spec if a trace shows exposed DMA between grid steps.
                    pl.BlockSpec((Bt, C, HW), lambda i: (i, 0, 0)),
                    pl.BlockSpec((C, Cr), lambda i: (0, 0)),
                    pl.BlockSpec((1, Cr), lambda i: (0, 0)),
                    pl.BlockSpec((Cr, C), lambda i: (0, 0)),
                    pl.BlockSpec((1, C), lambda i: (0, 0)),
                ],
                out_specs=pl.BlockSpec((Bt, C, HW), lambda i: (i, 0, 0)),
            ),
            compiler_params=pltpu.CompilerParams(
                dimension_semantics=("parallel",),
                vmem_limit_bytes=vmem_limit),
        )(x2, w1t, b1r, w2t, b2r)
        return out.reshape(B, C, H, W)

    # ---------------- two-pass path (very large C*H*W per batch) -----------
    want_split = (cores > 1 and B == 1)   # keep both megacore TCs busy, pass 1
    Ct, THW, HW_work, pad = _two_pass_tiling(C, HW, itemsize, tile_budget,
                                             want_split)
    if pad:
        # rare fallback: zero padding keeps the pooled mean exact because we
        # divide by the true H*W; padded output lanes are sliced off below.
        x2 = jnp.pad(x2, ((0, 0), (0, 0), (0, HW_work - HW)))
    nC = C // Ct
    nS = HW_work // THW
    tile_bytes = Ct * THW * itemsize

    # pass 1: per-channel spatial sums (reduction axis last, accumulate in out)
    vmem_pool = int(min(max(2 * tile_bytes + (1 << 20), 16 << 20), vmem_cap))
    pooled_sum = pl.pallas_call(
        _pool_partial_kernel,
        out_shape=jax.ShapeDtypeStruct((B, C, 1), jnp.float32),
        grid_spec=pltpu.PrefetchScalarGridSpec(
            num_scalar_prefetch=0,
            grid=(B, nC, nS),
            in_specs=[pl.BlockSpec((1, Ct, THW), lambda b, c, k: (b, c, k))],
            out_specs=pl.BlockSpec((1, Ct, 1), lambda b, c, k: (b, c, 0)),
        ),
        compiler_params=pltpu.CompilerParams(
            dimension_semantics=("parallel", "parallel", "arbitrary"),
            vmem_limit_bytes=vmem_pool),
    )(x2)

    # tiny squeeze/excite gate on (B, C): negligible next to the HBM passes;
    # folded into the wrapper between the two Pallas passes (per review).
    pooled = pooled_sum[:, :, 0] * inv_hw
    h = jnp.maximum(jnp.dot(pooled, w1t) + b1r, 0.0)
    scale = jax.nn.sigmoid(jnp.dot(h, w2t) + b2r)[:, :, None]       # (B, C, 1)

    # pass 2: fully parallel elementwise rescale
    vmem_scale = int(min(max(4 * tile_bytes + (1 << 20), 16 << 20), vmem_cap))
    out = pl.pallas_call(
        _scale_kernel,
        out_shape=jax.ShapeDtypeStruct((B, C, HW_work), x.dtype),
        grid_spec=pltpu.PrefetchScalarGridSpec(
            num_scalar_prefetch=0,
            grid=(B, nC, nS),
            in_specs=[
                pl.BlockSpec((1, Ct, THW), lambda b, c, k: (b, c, k)),
                pl.BlockSpec((1, Ct, 1), lambda b, c, k: (b, c, 0)),
            ],
            out_specs=pl.BlockSpec((1, Ct, THW), lambda b, c, k: (b, c, k)),
        ),
        compiler_params=pltpu.CompilerParams(
            dimension_semantics=("parallel", "parallel", "parallel"),
            vmem_limit_bytes=vmem_scale),
    )(x2, scale)
    if pad:
        out = out[:, :, :HW]
    return out.reshape(B, C, H, W)


# ---------------------------------------------------------------------------
# pure-JAX reference (mirrors the PyTorch forward)
# ---------------------------------------------------------------------------
def ca_layer_ref(x, w1, b1, w2, b2):
    y = jnp.mean(x, axis=(2, 3), keepdims=True)                  # (B, C, 1, 1)
    y = jnp.einsum('rc,bcij->brij', w1, y) + b1[None, :, :, None]
    y = jnp.maximum(y, 0.0)
    y = jnp.einsum('cr,brij->bcij', w2, y) + b2[None, :, :, None]
    y = jax.nn.sigmoid(y)
    return x * y


if __name__ == "__main__":
    def make_inputs(B, C, H, W, seed=0):
        Cr = C // 8
        key = jax.random.PRNGKey(seed)
        kx, k1, kb1, k2, kb2 = jax.random.split(key, 5)
        x = jax.random.normal(kx, (B, C, H, W), dtype=jnp.float32)
        w1 = jax.random.normal(k1, (Cr, C), dtype=jnp.float32) * 0.1
        b1 = jax.random.normal(kb1, (Cr, 1), dtype=jnp.float32) * 0.1
        w2 = jax.random.normal(k2, (C, Cr), dtype=jnp.float32) * 0.1
        b2 = jax.random.normal(kb2, (C, 1), dtype=jnp.float32) * 0.1
        return x, w1, b1, w2, b2

    def check(out, ref, name):
        assert out.shape == ref.shape, name
        assert jnp.allclose(out, ref, atol=1e-4, rtol=1e-4), name

    # 1) fused path, H*W not a multiple of 128 (no pad, no output slice)
    x, w1, b1, w2, b2 = make_inputs(2, 32, 12, 12, seed=0)
    out = jax.block_until_ready(ca_layer(x, w1, b1, w2, b2))
    check(out, ca_layer_ref(x, w1, b1, w2, b2), "fused non-128 HW")

    # 2) fused path, H*W a multiple of 128
    x, w1, b1, w2, b2 = make_inputs(2, 32, 16, 16, seed=1)
    out = jax.block_until_ready(ca_layer(x, w1, b1, w2, b2))
    check(out, ca_layer_ref(x, w1, b1, w2, b2), "fused 128-mult HW")

    # 3) two-pass path with a spatial-tiled reduction (THW divides HW, no pad)
    x, w1, b1, w2, b2 = make_inputs(2, 32, 16, 16, seed=2)
    out = jax.block_until_ready(
        ca_layer(x, w1, b1, w2, b2, force_two_pass=True,
                 two_pass_tile_bytes=16 * 1024))
    check(out, ca_layer_ref(x, w1, b1, w2, b2), "two-pass spatial tiled")

    # 4) two-pass path with channel tiling (HW % 128 != 0, still no pad)
    x, w1, b1, w2, b2 = make_inputs(1, 32, 12, 12, seed=3)
    out = jax.block_until_ready(
        ca_layer(x, w1, b1, w2, b2, force_two_pass=True,
                 two_pass_tile_bytes=8 * 1024))
    check(out, ca_layer_ref(x, w1, b1, w2, b2), "two-pass channel tiled")

    print("KERNEL_OK")
</pallas_src>

<mosaic_0001>
module attributes {stable_mosaic.version = 11 : i64} {
  func.func @_ca_fused_kernel(%arg0: i32, %arg1: memref<2x32x144xf32, #tpu.memory_space<vmem>>, %arg2: memref<32x4xf32, #tpu.memory_space<vmem>>, %arg3: memref<1x4xf32, #tpu.memory_space<vmem>>, %arg4: memref<4x32xf32, #tpu.memory_space<vmem>>, %arg5: memref<1x32xf32, #tpu.memory_space<vmem>>, %arg6: memref<2x32x144xf32, #tpu.memory_space<vmem>>) attributes {dimension_semantics = [#tpu.dimension_semantics<parallel>], iteration_bounds = array<i64: 1>, scalar_prefetch = 0 : i64, scratch_operands = 0 : i64, tpu.core_type = #tpu.core_type<tc>, window_params = [{transform_indices = @transform_0, window_bounds = array<i64: 2, 32, 144>}, {pipeline_mode = #tpu.pipeline_mode<synchronous>, transform_indices = @transform_1, window_bounds = array<i64: 32, 4>}, {pipeline_mode = #tpu.pipeline_mode<synchronous>, transform_indices = @transform_2, window_bounds = array<i64: 1, 4>}, {pipeline_mode = #tpu.pipeline_mode<synchronous>, transform_indices = @transform_3, window_bounds = array<i64: 4, 32>}, {pipeline_mode = #tpu.pipeline_mode<synchronous>, transform_indices = @transform_4, window_bounds = array<i64: 1, 32>}, {transform_indices = @transform_5, window_bounds = array<i64: 2, 32, 144>}]} {
    %c0 = arith.constant 0 : index
    %c0_0 = arith.constant 0 : index
    %c0_1 = arith.constant 0 : index
    %0 = vector.load %arg1[%c0, %c0_0, %c0_1] : memref<2x32x144xf32, #tpu.memory_space<vmem>>, vector<2x32x144xf32>
    %cst = arith.constant dense<0.000000e+00> : vector<2x32xf32>
    %1 = vector.multi_reduction <add>, %0, %cst [2] : vector<2x32x144xf32> to vector<2x32xf32>
    %cst_2 = arith.constant 0.0069444445 : f32
    %2 = vector.broadcast %cst_2 : f32 to vector<2x32xf32>
    %3 = arith.mulf %1, %2 : vector<2x32xf32>
    %c0_3 = arith.constant 0 : index
    %c0_4 = arith.constant 0 : index
    %4 = vector.load %arg2[%c0_3, %c0_4] : memref<32x4xf32, #tpu.memory_space<vmem>>, vector<32x4xf32>
    %cst_5 = arith.constant dense<0.000000e+00> : vector<2x4xf32>
    %5 = tpu.matmul %3, %4, %cst_5 {dimension_numbers = #tpu.dot_dimension_numbers<[1], [0], [0], [1], [0, 0, 1, 1], [], []>} : vector<2x32xf32>, vector<32x4xf32>, vector<2x4xf32> -> vector<2x4xf32>
    %c0_6 = arith.constant 0 : index
    %c0_7 = arith.constant 0 : index
    %6 = vector.load %arg3[%c0_6, %c0_7] : memref<1x4xf32, #tpu.memory_space<vmem>>, vector<1x4xf32>
    %7 = vector.broadcast %6 : vector<1x4xf32> to vector<2x4xf32>
    %8 = arith.addf %5, %7 : vector<2x4xf32>
    %cst_8 = arith.constant 0.000000e+00 : f32
    %9 = vector.broadcast %cst_8 : f32 to vector<2x4xf32>
    %10 = arith.maximumf %8, %9 : vector<2x4xf32>
    %c0_9 = arith.constant 0 : index
    %c0_10 = arith.constant 0 : index
    %11 = vector.load %arg4[%c0_9, %c0_10] : memref<4x32xf32, #tpu.memory_space<vmem>>, vector<4x32xf32>
    %cst_11 = arith.constant dense<0.000000e+00> : vector<2x32xf32>
    %12 = tpu.matmul %10, %11, %cst_11 {dimension_numbers = #tpu.dot_dimension_numbers<[1], [0], [0], [1], [0, 0, 1, 1], [], []>} : vector<2x4xf32>, vector<4x32xf32>, vector<2x32xf32> -> vector<2x32xf32>
    %c0_12 = arith.constant 0 : index
    %c0_13 = arith.constant 0 : index
    %13 = vector.load %arg5[%c0_12, %c0_13] : memref<1x32xf32, #tpu.memory_space<vmem>>, vector<1x32xf32>
    %14 = vector.broadcast %13 : vector<1x32xf32> to vector<2x32xf32>
    %15 = arith.addf %12, %14 : vector<2x32xf32>
    %16 = arith.negf %15 : vector<2x32xf32>
    %17 = math.exp %16 : vector<2x32xf32>
    %cst_14 = arith.constant 1.000000e+00 : f32
    %18 = vector.broadcast %cst_14 : f32 to vector<2x32xf32>
    %19 = arith.addf %18, %17 : vector<2x32xf32>
    %20 = arith.divf %18, %19 : vector<2x32xf32>
    %21 = vector.shape_cast %20 : vector<2x32xf32> to vector<2x32x1xf32>
    %22 = vector.broadcast %21 : vector<2x32x1xf32> to vector<2x32x144xf32>
    %23 = arith.mulf %0, %22 : vector<2x32x144xf32>
    %c0_15 = arith.constant 0 : index
    %c0_16 = arith.constant 0 : index
    %c0_17 = arith.constant 0 : index
    %24 = vector.load %arg6[%c0_15, %c0_16, %c0_17] : memref<2x32x144xf32, #tpu.memory_space<vmem>>, vector<2x32x144xf32>
    tpu.vector_store %arg6[%c0_15, %c0_16, %c0_17], %23 {strides = array<i32>} : memref<2x32x144xf32, #tpu.memory_space<vmem>>, vector<2x32x144xf32>,
    return
  }
  func.func @transform_0(%arg0: i32) -> (i32, i32, i32) {
    %c0_i32 = arith.constant 0 : i32
    %c0_i32_0 = arith.constant 0 : i32
    %c0_i32_1 = arith.constant 0 : i32
    return %arg0, %c0_i32, %c0_i32_0 : i32, i32, i32
  }
  func.func @transform_1(%arg0: i32) -> (i32, i32) {
    %c0_i32 = arith.constant 0 : i32
    %c0_i32_0 = arith.constant 0 : i32
    %c0_i32_1 = arith.constant 0 : i32
    return %c0_i32, %c0_i32_0 : i32, i32
  }
  func.func @transform_2(%arg0: i32) -> (i32, i32) {
    %c0_i32 = arith.constant 0 : i32
    %c0_i32_0 = arith.constant 0 : i32
    %c0_i32_1 = arith.constant 0 : i32
    return %c0_i32, %c0_i32_0 : i32, i32
  }
  func.func @transform_3(%arg0: i32) -> (i32, i32) {
    %c0_i32 = arith.constant 0 : i32
    %c0_i32_0 = arith.constant 0 : i32
    %c0_i32_1 = arith.constant 0 : i32
    return %c0_i32, %c0_i32_0 : i32, i32
  }
  func.func @transform_4(%arg0: i32) -> (i32, i32) {
    %c0_i32 = arith.constant 0 : i32
    %c0_i32_0 = arith.constant 0 : i32
    %c0_i32_1 = arith.constant 0 : i32
    return %c0_i32, %c0_i32_0 : i32, i32
  }
  func.func @transform_5(%arg0: i32) -> (i32, i32, i32) {
    %c0_i32 = arith.constant 0 : i32
    %c0_i32_0 = arith.constant 0 : i32
    %c0_i32_1 = arith.constant 0 : i32
    return %arg0, %c0_i32, %c0_i32_0 : i32, i32, i32
  }
}

</mosaic_0001>

<llo_original>
// kernel: tpu_custom_call.1
$region0: #{tpu_custom_call.1}
  #allocation0 [shape = 'u32[]', space=smem, size = 0x4, offset = 0x4, fixed_abs, tag = 'smem constant byte address 0x4 - core index']
  #allocation1 [shape = 'u32[72,128]{1,0:T(1,128)}', space=vmem, size = 0x9000, scoped, tag = 'internal scratch']
  %s0 = inlined_call_operand.hbm [shape: f32[2,32,144], index: 0, kind: input, shape index: {}]
  %s1 = inlined_call_operand.vmem [shape: f32[32,4], index: 1, kind: input, shape index: {}]
  %s2 = inlined_call_operand.vmem [shape: f32[1,4], index: 2, kind: input, shape index: {}]
  %s3 = inlined_call_operand.vmem [shape: f32[4,32], index: 3, kind: input, shape index: {}]
  %s4 = inlined_call_operand.vmem [shape: f32[1,32], index: 4, kind: input, shape index: {}]
  %s5 = inlined_call_operand.hbm [shape: f32[2,32,144], index: 5, kind: output, shape index: {}]
  %s6 = sld [smem:[#allocation0]]
  $region34: #{tpu_custom_call.1} parent=0
    _
  %s8 = ssub.s32 1, %s6
  %s9 = scalar_select 0, %s8, %s6
  $region1: #{tpu_custom_call.1} parent=0
    #allocation2 [shape = 'u8[65536]{0}', space=vmem, size = 0x10000, scoped, tag = 'input window, operand 0, single buffered']
    #allocation3 [shape = 's32[1]{0}', space=sflag, size = 0x4, scoped, tag = 'scoped memory for tpu_custom_call.1']
    #allocation4 [shape = 's32[1]{0}', space=sflag, size = 0x4, scoped, tag = 'scoped memory for tpu_custom_call.1']
    #allocation5 [shape = 'u8[65536]{0}', space=vmem, size = 0x10000, scoped, tag = 'output window, operand 0, single buffered']
    %10 = vsyncpa [#allocation3], 0
    %11 = vsyncpa [#allocation4], 0
    // Predicated region
    $region2: #{tpu_custom_call.1} parent=1 // pred_check
      _
    $region3: #{tpu_custom_call.1} parent=1 // pred_check_branch
      %13 = sbr.rel (0) target = $region5
    $region4: #{tpu_custom_call.1} parent=1 // pred_region
      %15 = vsyncadd [#allocation3], 0
      %s16 = sshll.u32 %s0, 4
      %s17 = int_to_ptr.hbm [resolvable:$true] %s16
      %s18 = sshll.u32 [#allocation2], 4
      %s19 = int_to_ptr.vmem [resolvable:$true] %s18
      %24 = dma.hbm_to_vmem [thread:$0]  %s17, 2048, %s19, [#allocation3], 256, 256, 16
    $region5: #{tpu_custom_call.1} parent=1 // pred_fallthru
      _
    // Predicated region
    $region6: #{tpu_custom_call.1} parent=1 // pred_check
      _
    $region7: #{tpu_custom_call.1} parent=1 // pred_check_branch
      %26 = sbr.rel (0) target = $region9
    $region8: #{tpu_custom_call.1} parent=1 // pred_region
      _
    $region9: #{tpu_custom_call.1} parent=1 // pred_fallthru
      _
    // Predicated region
    $region10: #{tpu_custom_call.1} parent=1 // pred_check
      _
    $region11: #{tpu_custom_call.1} parent=1 // pred_check_branch
      %28 = sbr.rel (0) target = $region13
    $region12: #{tpu_custom_call.1} parent=1 // pred_region
      _
    $region13: #{tpu_custom_call.1} parent=1 // pred_fallthru
      _
    // Predicated region
    $region14: #{tpu_custom_call.1} parent=1 // pred_check
      _
    $region15: #{tpu_custom_call.1} parent=1 // pred_check_branch
      %30 = sbr.rel (0) target = $region17
    $region16: #{tpu_custom_call.1} parent=1 // pred_region
      _
    $region17: #{tpu_custom_call.1} parent=1 // pred_fallthru
      _
    // Predicated region
    $region18: #{tpu_custom_call.1} parent=1 // pred_check
      _
    $region19: #{tpu_custom_call.1} parent=1 // pred_check_branch
      %32 = sbr.rel (0) target = $region21
    $region20: #{tpu_custom_call.1} parent=1 // pred_region
      _
    $region21: #{tpu_custom_call.1} parent=1 // pred_fallthru
      _
    // Predicated region
    $region22: #{tpu_custom_call.1} parent=1 // pred_check
      _
    $region23: #{tpu_custom_call.1} parent=1 // pred_check_branch
      %34 = sbr.rel (0) target = $region25
    $region24: #{tpu_custom_call.1} parent=1 // pred_region
      %36 = dma.done [#allocation3], 2048
    $region25: #{tpu_custom_call.1} parent=1 // pred_fallthru
      _
    %v37 = vld [vmem:[#allocation2] sm:$0xff]
    %v38 = vld [vmem:[#allocation2 + $0x8] sm:$0xff]
    %v39 = vld [vmem:[#allocation2 + $0x10] sm:$0xff]
    %v40 = vld [vmem:[#allocation2 + $0x18] sm:$0xff]
    %v41 = vld [vmem:[#allocation2 + $0x20] sm:$0xff]
    %v42 = vld [vmem:[#allocation2 + $0x28] sm:$0xff]
    %v43 = vld [vmem:[#allocation2 + $0x30] sm:$0xff]
    %v44 = vld [vmem:[#allocation2 + $0x38] sm:$0xff]
    %v45 = vld [vmem:[#allocation2 + $0x40] sm:$0xff]
    %v46 = vld [vmem:[#allocation2 + $0x48] sm:$0xff]
    %v47 = vld [vmem:[#allocation2 + $0x50] sm:$0xff]
    %v48 = vld [vmem:[#allocation2 + $0x58] sm:$0xff]
    %v49 = vld [vmem:[#allocation2 + $0x60] sm:$0xff]
    %v50 = vld [vmem:[#allocation2 + $0x68] sm:$0xff]
    %v51 = vld [vmem:[#allocation2 + $0x70] sm:$0xff]
    %v52 = vld [vmem:[#allocation2 + $0x78] sm:$0xff]
    %vm53 = vcmask 130048
    %v54 = vsel %vm53, %v38, 0.0
    %v55 = vadd.f32 %v37, %v54
    %56 = vadd.xlane.f32.xlu0 %v55
    %v57 = vpop.xlane.xlu0 %56
    %v58 = vsel %vm53, %v40, 0.0
    %v59 = vadd.f32 %v39, %v58
    %60 = vadd.xlane.f32.xlu0 %v59
    %v61 = vpop.xlane.xlu0 %60
    %v62 = vsel %vm53, %v42, 0.0
    %v63 = vadd.f32 %v41, %v62
    %64 = vadd.xlane.f32.xlu0 %v63
    %v65 = vpop.xlane.xlu0 %64
    %v66 = vsel %vm53, %v44, 0.0
    %v67 = vadd.f32 %v43, %v66
    %68 = vadd.xlane.f32.xlu0 %v67
    %v69 = vpop.xlane.xlu0 %68
    %v70 = vsel %vm53, %v46, 0.0
    %v71 = vadd.f32 %v45, %v70
    %72 = vadd.xlane.f32.xlu0 %v71
    %v73 = vpop.xlane.xlu0 %72
    %v74 = vsel %vm53, %v48, 0.0
    %v75 = vadd.f32 %v47, %v74
    %76 = vadd.xlane.f32.xlu0 %v75
    %v77 = vpop.xlane.xlu0 %76
    %v78 = vsel %vm53, %v50, 0.0
    %v79 = vadd.f32 %v49, %v78
    %80 = vadd.xlane.f32.xlu0 %v79
    %v81 = vpop.xlane.xlu0 %80
    %v82 = vsel %vm53, %v52, 0.0
    %v83 = vadd.f32 %v51, %v82
    %84 = vadd.xlane.f32.xlu0 %v83
    %v85 = vpop.xlane.xlu0 %84
    %v86 = vmul.f32 %v57, 0.0069444445
    %v87 = vmul.f32 %v61, 0.0069444445
    %v88 = vmul.f32 %v65, 0.0069444445
    %v89 = vmul.f32 %v69, 0.0069444445
    %v90 = vmul.f32 %v73, 0.0069444445
    %v91 = vmul.f32 %v77, 0.0069444445
    %v92 = vmul.f32 %v81, 0.0069444445
    %v93 = vmul.f32 %v85, 0.0069444445
    %v94 = vld [vmem:[%s1] sm:$0xff]
    %v95 = vld [vmem:[%s1 + $0x8] sm:$0xff]
    %v96 = vld [vmem:[%s1 + $0x10] sm:$0xff]
    %v97 = vld [vmem:[%s1 + $0x18] sm:$0xff]
    %v98 = vld [vmem:[%s2] sm:$0x1]
    %v100 = vperm.slane %v98, 0
    %v110 = vlaneseq
    %v111 = vand.u32 %v110, 127
    %v112 = vperm.slane %v86, %v111
    %v113 = vadd.s32 %v111, 4294967288
    %v114 = vperm.slane %v87, %v113
    %vm115 = vcmask 130112
    %v116 = vsel %vm115, %v114, %v112
    %v117 = vadd.s32 %v111, 4294967280
    %v118 = vperm.slane %v88, %v117
    %vm119 = vcmask 195712
    %v120 = vsel %vm119, %v118, %v116
    %v121 = vadd.s32 %v111, 4294967272
    %v122 = vperm.slane %v89, %v121
    %vm123 = vcmask 261312
    %v124 = vsel %vm123, %v122, %v120
    %v125 = vperm.slane %v90, %v111
    %v126 = vperm.slane %v91, %v113
    %v127 = vsel %vm115, %v126, %v125
    %v128 = vperm.slane %v92, %v117
    %v129 = vsel %vm119, %v128, %v127
    %v130 = vperm.slane %v93, %v121
    %v131 = vsel %vm123, %v130, %v129
    %vm132 = vcmask 1041409
    %v133 = vsel %vm132, %v131, %v124
    %vm134 = vcmask 261120
    %v135 = vsel %vm134, %v133, 0
    %137 = vmatpush.msra.mxu0 0.0
    %138 = vmatpush.msra.mxu0 0.0
    %139 = vmatpush.msra.mxu0 0.0
    %140 = vmatpush.msra.mxu0 0.0
    %141 = vmatpush.msra.mxu0 0.0
    %142 = vmatpush.msra.mxu0 0.0
    %143 = vmatpush.msra.mxu0 0.0
    %144 = vmatpush.msra.mxu0 0.0
    %145 = vmatpush.msra.mxu0 0.0
    %146 = vmatpush.msra.mxu0 0.0
    %147 = vmatpush.msra.mxu0 0.0
    %148 = vmatpush.msra.mxu0 0.0
    %149 = vmatpush.msra.mxu0 %v97
    %150 = vmatpush.msra.mxu0 %v96
    %151 = vmatpush.msra.mxu0 %v95
    %152 = vmatpush.msra.mxu0 %v94
    %153 = vmatmul.f32.gmra.mxu0 %v135
    %v154 = vpop.f32.mrf.mxu0
    %v155 = vadd.f32 %v100, %v154
    %156 = vdwg.mxu0
    %v157 = vmax.f32 %v155, 0.0
    %v158 = vld [vmem:[%s3] sm:$0xf]
    %v159 = vld [vmem:[%s4] sm:$0x1]
    %v161 = vperm.slane %v159, 0
    %vm163 = vcmask 31744
    %v165 = vsel %vm163, %v157, 0
    %vm167 = vcmask 1043456
    %v169 = vsel %vm167, %v158, 0
    %171 = vmatpush.msra.mxu0 0.0
    %172 = vmatpush.msra.mxu0 0.0
    %173 = vmatpush.msra.mxu0 0.0
    %174 = vmatpush.msra.mxu0 0.0
    %175 = vmatpush.msra.mxu0 0.0
    %176 = vmatpush.msra.mxu0 0.0
    %177 = vmatpush.msra.mxu0 0.0
    %178 = vmatpush.msra.mxu0 0.0
    %179 = vmatpush.msra.mxu0 0.0
    %180 = vmatpush.msra.mxu0 0.0
    %181 = vmatpush.msra.mxu0 0.0
    %182 = vmatpush.msra.mxu0 0.0
    %183 = vmatpush.msra.mxu0 0.0
    %184 = vmatpush.msra.mxu0 0.0
    %185 = vmatpush.msra.mxu0 0.0
    %186 = vmatpush.msra.mxu0 %v169
    %187 = vmatmul.f32.gmra.mxu0 %v165
    %v188 = vpop.f32.mrf.mxu0
    %v189 = vadd.f32 %v161, %v188
    %190 = vdwg.mxu0
    %v191 = vxor.u32 %v189, 2147483648
    %v192 = vmul.f32 %v191, 1.442695
    %v193 = vpow.pop %v192
    %v194 = vadd.f32 %v193, 1.0
    %v195 = vrcp.pop %v194
    %v196 = vmul.f32 %v194, %v195
    %v197 = vsub.f32 1.0, %v196
    %v198 = vmul.f32 %v195, %v197
    %v199 = vadd.f32 %v195, %v198
    %vm200 = vweird.f32 %v194
    %vm201 = vweird.f32 %v195
    %vm202 = vmor %vm200, %vm201
    %v203 = vsel %vm202, %v195, %v199
    %v204 = vand.u32 2147483647, %v194
    %vm205 = vcmp.eq.f32.partialorder %v204, 8.507059e+37
    %v206 = vand.u32 %v194, 2147483648
    %v207 = vor.u32 1.1754944e-38, %v206
    %v208 = vsel %vm205, %v207, %v203
    %v209 = vmul.f32 1.0, %v208
    %v210 = vperm.slane %v209, 0
    %v211 = vlaneseq
    %v212 = vshrl.u32 %v211, 7
    %214 = vset.pattern.permute.xlu0 %v212
    %215 = vperm.xlu0 %214, %v210
    %v216 = vpop.permute.xlu0 %215
    %v217 = vlaneseq
    %v218 = vshrl.u32 %v217, 7
    %v219 = vadd.s32 %v218, 8
    %220 = vset.pattern.permute.xlu0 %v219
    %221 = vperm.xlu0 %220, %v210
    %v222 = vpop.permute.xlu0 %221
    %v223 = vlaneseq
    %v224 = vshrl.u32 %v223, 7
    %v225 = vadd.s32 %v224, 16
    %226 = vset.pattern.permute.xlu0 %v225
    %227 = vperm.xlu0 %226, %v210
    %v228 = vpop.permute.xlu0 %227
    %v229 = vlaneseq
    %v230 = vshrl.u32 %v229, 7
    %v231 = vadd.s32 %v230, 24
    %232 = vset.pattern.permute.xlu0 %v231
    %233 = vperm.xlu0 %232, %v210
    %v234 = vpop.permute.xlu0 %233
    %v235 = vperm.slane %v209, 1
    %v236 = vlaneseq
    %v237 = vshrl.u32 %v236, 7
    %239 = vset.pattern.permute.xlu0 %v237
    %240 = vperm.xlu0 %239, %v235
    %v241 = vpop.permute.xlu0 %240
    %v242 = vlaneseq
    %v243 = vshrl.u32 %v242, 7
    %v244 = vadd.s32 %v243, 8
    %245 = vset.pattern.permute.xlu0 %v244
    %246 = vperm.xlu0 %245, %v235
    %v247 = vpop.permute.xlu0 %246
    %v248 = vlaneseq
    %v249 = vshrl.u32 %v248, 7
    %v250 = vadd.s32 %v249, 16
    %251 = vset.pattern.permute.xlu0 %v250
    %252 = vperm.xlu0 %251, %v235
    %v253 = vpop.permute.xlu0 %252
    %v254 = vlaneseq
    %v255 = vshrl.u32 %v254, 7
    %v256 = vadd.s32 %v255, 24
    %257 = vset.pattern.permute.xlu0 %v256
    %258 = vperm.xlu0 %257, %v235
    %v259 = vpop.permute.xlu0 %258
    %v260 = vmul.f32 %v37, %v216
    %v261 = vmul.f32 %v38, %v216
    %v262 = vmul.f32 %v39, %v222
    %v263 = vmul.f32 %v40, %v222
    %v264 = vmul.f32 %v41, %v228
    %v265 = vmul.f32 %v42, %v228
    %v266 = vmul.f32 %v43, %v234
    %v267 = vmul.f32 %v44, %v234
    %v268 = vmul.f32 %v45, %v241
    %v269 = vmul.f32 %v46, %v241
    %v270 = vmul.f32 %v47, %v247
    %v271 = vmul.f32 %v48, %v247
    %v272 = vmul.f32 %v49, %v253
    %v273 = vmul.f32 %v50, %v253
    %v274 = vmul.f32 %v51, %v259
    %v275 = vmul.f32 %v52, %v259
    %276 = vst [vmem:[#allocation5] sm:$0xff] %v260
    %277 = vst.msk [vmem:[#allocation5 + $0x8] sm:$0xff] %vm53, %v261
    %278 = vst [vmem:[#allocation5 + $0x10] sm:$0xff] %v262
    %279 = vst.msk [vmem:[#allocation5 + $0x18] sm:$0xff] %vm53, %v263
    %280 = vst [vmem:[#allocation5 + $0x20] sm:$0xff] %v264
    %281 = vst.msk [vmem:[#allocation5 + $0x28] sm:$0xff] %vm53, %v265
    %282 = vst [vmem:[#allocation5 + $0x30] sm:$0xff] %v266
    %283 = vst.msk [vmem:[#allocation5 + $0x38] sm:$0xff] %vm53, %v267
    %284 = vst [vmem:[#allocation5 + $0x40] sm:$0xff] %v268
    %285 = vst.msk [vmem:[#allocation5 + $0x48] sm:$0xff] %vm53, %v269
    %286 = vst [vmem:[#allocation5 + $0x50] sm:$0xff] %v270
    %287 = vst.msk [vmem:[#allocation5 + $0x58] sm:$0xff] %vm53, %v271
    %288 = vst [vmem:[#allocation5 + $0x60] sm:$0xff] %v272
    %289 = vst.msk [vmem:[#allocation5 + $0x68] sm:$0xff] %vm53, %v273
    %290 = vst [vmem:[#allocation5 + $0x70] sm:$0xff] %v274
    %291 = vst.msk [vmem:[#allocation5 + $0x78] sm:$0xff] %vm53, %v275
    // Predicated region
    $region26: #{tpu_custom_call.1} parent=1 // pred_check
      _
    $region27: #{tpu_custom_call.1} parent=1 // pred_check_branch
      %293 = sbr.rel (0) target = $region29
    $region28: #{tpu_custom_call.1} parent=1 // pred_region
      %295 = vsyncadd [#allocation4], 0
      %s296 = sshll.u32 [#allocation5], 4
      %s297 = int_to_ptr.vmem [resolvable:$true] %s296
      %s298 = sshll.u32 %s5, 4
      %s299 = int_to_ptr.hbm [resolvable:$true] %s298
      %304 = dma.vmem_to_hbm [thread:$0]  %s297, 2048, %s299, [#allocation4], 256, 256, 16
    $region29: #{tpu_custom_call.1} parent=1 // pred_fallthru
      _
    // Predicated region
    $region30: #{tpu_custom_call.1} parent=1 // pred_check
      _
    $region31: #{tpu_custom_call.1} parent=1 // pred_check_branch
      %306 = sbr.rel (0) target = $region33
    $region32: #{tpu_custom_call.1} parent=1 // pred_region
      %308 = dma.done [#allocation4], 2048
    $region33: #{tpu_custom_call.1} parent=1 // pred_fallthru
      _
    %309 = vsyncpa [#allocation3], 1
    %310 = vsyncpa [#allocation4], 1

</llo_original>
